<compile_context>
chip_gen: v7x
topology: tpu7x:2x2x1
jax: 0.10.0
libtpu: 0.0.40
codegen_flags: <defaults>
</compile_context>

<pallas_src>
import functools
import math

import jax
import jax.numpy as jnp
from jax.experimental import pallas as pl
from jax.experimental.pallas import tpu as pltpu

EPSILON = 1e-4
_LANES = 128
_SUBLANES = 8
# ~6 MiB for (x0_blk + x1_blk + out_blk); double-buffering => ~12 MiB pipeline.
_TARGET_BLOCK_SET_BYTES = 6 << 20


def _bifpn_concat2_tiled_kernel(nblk0, scale_ref, x0_ref, x1_ref, out_ref):
    """One program = one fully aligned (N, tb, 128) output block.

    Programs j < nblk0 cover the x0 region of the concatenated output,
    programs j >= nblk0 cover the x1 region.  Each scale read sits inside its
    own branch so the idle branch costs nothing.
    """
    j = pl.program_id(0)

    @pl.when(j < nblk0)
    def _():
        out_ref[...] = (x0_ref[...].astype(jnp.float32) * scale_ref[0]).astype(out_ref.dtype)

    @pl.when(j >= nblk0)
    def _():
        out_ref[...] = (x1_ref[...].astype(jnp.float32) * scale_ref[1]).astype(out_ref.dtype)


def _bifpn_concat2_whole_kernel(l0, scale_ref, x0_ref, x1_ref, out_ref):
    """Fallback: whole arrays resident in VMEM, concat via two static-slice stores."""
    out_ref[:, :l0] = (x0_ref[...].astype(jnp.float32) * scale_ref[0]).astype(out_ref.dtype)
    out_ref[:, l0:] = (x1_ref[...].astype(jnp.float32) * scale_ref[1]).astype(out_ref.dtype)


def _divisors(x):
    out = set()
    i = 1
    while i * i <= x:
        if x % i == 0:
            out.add(i)
            out.add(x // i)
        i += 1
    return sorted(out)


def _pick_sublane_tile(g_blocks, bytes_per_block_row, target_bytes):
    """Largest sublane-dense (multiple-of-8) divisor of g_blocks within budget.

    bytes_per_block_row = VMEM bytes one sublane-block row (tb == 1) of the
    full working set (x0 block + x1 block + out block) costs.
    Returns 0 if no sublane-dense tiling exists (caller falls back).
    """
    dense = [d for d in _divisors(g_blocks) if d % _SUBLANES == 0]
    if not dense:
        return 0
    in_budget = [d for d in dense if d * bytes_per_block_row <= target_bytes]
    # If even the smallest dense tile busts the budget, take it anyway and let
    # the explicit vmem_limit grow; correctness first, such shapes are rare.
    return max(in_budget) if in_budget else min(dense)


@functools.partial(jax.jit, static_argnames=("out_dtype",))
def bifpn_concat2(w, x0, x1, *, out_dtype=None):
    """Pallas equivalent of BiFPN_Concat2.forward([x0, x1]) with dimension=1.

    out_dtype=None reproduces torch's promotion (f32 weights -> f32 output).
    Passing e.g. out_dtype=jnp.bfloat16 is an opt-in fast path that halves HBM
    write bytes on bf16 pipelines (v6e/v7x).
    """
    assert x0.ndim == 4 and x1.ndim == 4
    assert x0.dtype == x1.dtype, "branches must share a dtype"
    assert w.shape == (2,)
    n, c0, h, wd = x0.shape
    n1, c1, h1, wd1 = x1.shape
    assert (n, h, wd) == (n1, h1, wd1), "non-concat dims must match"

    if out_dtype is None:
        out_dtype = jnp.promote_types(w.dtype, x0.dtype)
    in_itemsize = jnp.dtype(x0.dtype).itemsize
    out_itemsize = jnp.dtype(out_dtype).itemsize

    l0 = c0 * h * wd
    l1 = c1 * h * wd
    l_tot = l0 + l1

    # Hoist the scalar weight normalization out of the per-tile loop; the two
    # normalized scales travel to the kernel through SMEM.
    w32 = w.astype(jnp.float32)
    scale = w32 / (jnp.sum(w32, axis=0) + EPSILON)

    cost = pl.CostEstimate(
        flops=n * l_tot,
        transcendentals=0,
        bytes_accessed=n * l_tot * (in_itemsize + out_itemsize) + 8,
    )

    use_tiled = (l0 % _LANES == 0) and (l1 % _LANES == 0)
    if use_tiled:
        b0, b1 = l0 // _LANES, l1 // _LANES
        # Per-sublane-block-row VMEM cost of the working set: one x0 block,
        # one x1 block (the idle input still holds a buffer) and one output
        # block (budgeted with its own, possibly promoted, itemsize).
        bytes_per_row = n * _LANES * (2 * in_itemsize + out_itemsize)
        tb = _pick_sublane_tile(math.gcd(b0, b1), bytes_per_row, _TARGET_BLOCK_SET_BYTES)
        use_tiled = tb > 0

    if use_tiled:
        b_tot = b0 + b1
        nblk0 = b0 // tb
        grid = (b_tot // tb,)
        # 2 pipeline buffers per operand, plus slack for compiler scratch.
        vmem_limit = int(min(max(2 * tb * bytes_per_row + (2 << 20), 16 << 20), 48 << 20))

        out_3d = pl.pallas_call(
            functools.partial(_bifpn_concat2_tiled_kernel, nblk0),
            out_shape=jax.ShapeDtypeStruct((n, b_tot, _LANES), out_dtype),
            grid=grid,
            in_specs=[
                # Two normalized f32 scales, shared by every grid step.
                pl.BlockSpec(memory_space=pltpu.MemorySpace.SMEM),
                # x0: clamp block index in the x1 region -> block revisit, DMA elided.
                pl.BlockSpec((n, tb, _LANES),
                             lambda j: (0, jnp.minimum(j, nblk0 - 1), 0)),
                # x1: clamp block index in the x0 region -> its block 0 prefetched early.
                pl.BlockSpec((n, tb, _LANES),
                             lambda j: (0, jnp.maximum(j - nblk0, 0), 0)),
            ],
            out_specs=pl.BlockSpec((n, tb, _LANES), lambda j: (0, j, 0)),
            compiler_params=pltpu.CompilerParams(
                dimension_semantics=("parallel",),
                vmem_limit_bytes=vmem_limit,
            ),
            cost_estimate=cost,
        )(scale, x0.reshape(n, b0, _LANES), x1.reshape(n, b1, _LANES))
        return out_3d.reshape(n, c0 + c1, h, wd)

    # ---- Fallback: whole arrays in VMEM with full-dim blocks (always legal). ----
    # TODO(synk): very large shapes whose flattened length is not 128-aligned
    # would need a padded tiling here; real BiFPN feature maps never hit this.
    whole_bytes = 2 * n * l_tot * (in_itemsize + out_itemsize) + (2 << 20)
    vmem_limit = int(min(max(whole_bytes, 16 << 20), 48 << 20))
    out_2d = pl.pallas_call(
        functools.partial(_bifpn_concat2_whole_kernel, l0),
        out_shape=jax.ShapeDtypeStruct((n, l_tot), out_dtype),
        grid=(1,),
        in_specs=[
            pl.BlockSpec(memory_space=pltpu.MemorySpace.SMEM),
            pl.BlockSpec((n, l0), lambda i: (0, 0)),
            pl.BlockSpec((n, l1), lambda i: (0, 0)),
        ],
        out_specs=pl.BlockSpec((n, l_tot), lambda i: (0, 0)),
        compiler_params=pltpu.CompilerParams(vmem_limit_bytes=vmem_limit),
        cost_estimate=cost,
    )(scale, x0.reshape(n, l0), x1.reshape(n, l1))
    return out_2d.reshape(n, c0 + c1, h, wd)


def bifpn_concat2_ref(w, x0, x1):
    """Pure-JAX reference mirroring the PyTorch forward."""
    weight = w / (jnp.sum(w, axis=0) + EPSILON)
    return jnp.concatenate([weight[0] * x0, weight[1] * x1], axis=1)


if __name__ == "__main__":
    key = jax.random.PRNGKey(0)
    k0, k1, k2 = jax.random.split(key, 3)

    # Small NCHW inputs consistent with the module's forward (concat on dim=1).
    x0 = jax.random.normal(k0, (2, 4, 16, 16), dtype=jnp.float32)
    x1 = jax.random.normal(k1, (2, 4, 16, 16), dtype=jnp.float32)
    # Deterministic parameter init matching nn.Parameter(torch.ones(2)).
    w = jnp.ones((2,), dtype=jnp.float32)

    out = jax.block_until_ready(bifpn_concat2(w, x0, x1))
    ref = bifpn_concat2_ref(w, x0, x1)
    assert out.shape == (2, 8, 16, 16), out.shape
    assert out.dtype == ref.dtype
    assert jnp.allclose(out, ref, atol=1e-6, rtol=1e-6), "mismatch vs reference"

    # Asymmetric channel counts exercise the concat boundary / clamped index maps.
    x1b = jax.random.normal(k2, (2, 8, 16, 16), dtype=jnp.float32)
    w2 = jnp.array([0.7, 1.3], dtype=jnp.float32)
    out2 = jax.block_until_ready(bifpn_concat2(w2, x0, x1b))
    ref2 = bifpn_concat2_ref(w2, x0, x1b)
    assert out2.shape == (2, 12, 16, 16), out2.shape
    assert jnp.allclose(out2, ref2, atol=1e-6, rtol=1e-6), "mismatch vs reference (asym)"

    # Opt-in bf16 output fast path (halves HBM write bytes on v6e/v7x).
    x0_bf = x0.astype(jnp.bfloat16)
    x1_bf = x1b.astype(jnp.bfloat16)
    out3 = jax.block_until_ready(bifpn_concat2(w2, x0_bf, x1_bf, out_dtype=jnp.bfloat16))
    ref3 = bifpn_concat2_ref(w2, x0_bf.astype(jnp.float32), x1_bf.astype(jnp.float32))
    assert out3.dtype == jnp.bfloat16
    assert jnp.allclose(out3.astype(jnp.float32), ref3, atol=5e-2, rtol=5e-2), "mismatch (bf16)"

    print("KERNEL_OK")
</pallas_src>

<mosaic_0001>
module attributes {stable_mosaic.version = 11 : i64} {
  func.func @_bifpn_concat2_tiled_kernel(%arg0: i32, %arg1: memref<2xf32, #tpu.memory_space<smem>>, %arg2: memref<2x8x128xf32, #tpu.memory_space<vmem>>, %arg3: memref<2x8x128xf32, #tpu.memory_space<vmem>>, %arg4: memref<2x8x128xf32, #tpu.memory_space<vmem>>) attributes {dimension_semantics = [#tpu.dimension_semantics<parallel>], iteration_bounds = array<i64: 2>, scalar_prefetch = 0 : i64, scratch_operands = 0 : i64, tpu.core_type = #tpu.core_type<tc>, window_params = [{transform_indices = @transform_0, window_bounds = array<i64: 2>}, {transform_indices = @transform_1, window_bounds = array<i64: 2, 8, 128>}, {transform_indices = @transform_2, window_bounds = array<i64: 2, 8, 128>}, {transform_indices = @transform_3, window_bounds = array<i64: 2, 8, 128>}]} {
    %c1_i32 = arith.constant 1 : i32
    %0 = arith.cmpi slt, %arg0, %c1_i32 : i32
    %1 = arith.extui %0 : i1 to i32
    %c0_i32 = arith.constant 0 : i32
    %2 = arith.cmpi ne, %1, %c0_i32 : i32
    scf.if %2 {
      %c0 = arith.constant 0 : index
      %c0_2 = arith.constant 0 : index
      %c0_3 = arith.constant 0 : index
      %6 = vector.load %arg2[%c0, %c0_2, %c0_3] : memref<2x8x128xf32, #tpu.memory_space<vmem>>, vector<2x8x128xf32>
      %c0_4 = arith.constant 0 : index
      %7 = memref.load %arg1[%c0_4] : memref<2xf32, #tpu.memory_space<smem>>
      %8 = vector.broadcast %7 : f32 to vector<2x8x128xf32>
      %9 = arith.mulf %6, %8 : vector<2x8x128xf32>
      %c0_5 = arith.constant 0 : index
      %c0_6 = arith.constant 0 : index
      %c0_7 = arith.constant 0 : index
      %10 = vector.load %arg4[%c0_5, %c0_6, %c0_7] : memref<2x8x128xf32, #tpu.memory_space<vmem>>, vector<2x8x128xf32>
      tpu.vector_store %arg4[%c0_5, %c0_6, %c0_7], %9 {strides = array<i32>} : memref<2x8x128xf32, #tpu.memory_space<vmem>>, vector<2x8x128xf32>,
    } else {
    }
    %c1_i32_0 = arith.constant 1 : i32
    %3 = arith.cmpi sge, %arg0, %c1_i32_0 : i32
    %4 = arith.extui %3 : i1 to i32
    %c0_i32_1 = arith.constant 0 : i32
    %5 = arith.cmpi ne, %4, %c0_i32_1 : i32
    scf.if %5 {
      %c0 = arith.constant 0 : index
      %c0_2 = arith.constant 0 : index
      %c0_3 = arith.constant 0 : index
      %6 = vector.load %arg3[%c0, %c0_2, %c0_3] : memref<2x8x128xf32, #tpu.memory_space<vmem>>, vector<2x8x128xf32>
      %c1 = arith.constant 1 : index
      %7 = memref.load %arg1[%c1] : memref<2xf32, #tpu.memory_space<smem>>
      %8 = vector.broadcast %7 : f32 to vector<2x8x128xf32>
      %9 = arith.mulf %6, %8 : vector<2x8x128xf32>
      %c0_4 = arith.constant 0 : index
      %c0_5 = arith.constant 0 : index
      %c0_6 = arith.constant 0 : index
      %10 = vector.load %arg4[%c0_4, %c0_5, %c0_6] : memref<2x8x128xf32, #tpu.memory_space<vmem>>, vector<2x8x128xf32>
      tpu.vector_store %arg4[%c0_4, %c0_5, %c0_6], %9 {strides = array<i32>} : memref<2x8x128xf32, #tpu.memory_space<vmem>>, vector<2x8x128xf32>,
    } else {
    }
    return
  }
  func.func @transform_0(%arg0: i32) -> i32 {
    %c0_i32 = arith.constant 0 : i32
    %c0_i32_0 = arith.constant 0 : i32
    return %c0_i32 : i32
  }
  func.func @transform_1(%arg0: i32) -> (i32, i32, i32) {
    %c0_i32 = arith.constant 0 : i32
    %0 = arith.minsi %arg0, %c0_i32 : i32
    %c0_i32_0 = arith.constant 0 : i32
    %c0_i32_1 = arith.constant 0 : i32
    %c0_i32_2 = arith.constant 0 : i32
    return %c0_i32_0, %0, %c0_i32_1 : i32, i32, i32
  }
  func.func @transform_2(%arg0: i32) -> (i32, i32, i32) {
    %c1_i32 = arith.constant 1 : i32
    %0 = arith.subi %arg0, %c1_i32 : i32
    %c0_i32 = arith.constant 0 : i32
    %1 = arith.maxsi %0, %c0_i32 : i32
    %c0_i32_0 = arith.constant 0 : i32
    %c0_i32_1 = arith.constant 0 : i32
    %c0_i32_2 = arith.constant 0 : i32
    return %c0_i32_0, %1, %c0_i32_1 : i32, i32, i32
  }
  func.func @transform_3(%arg0: i32) -> (i32, i32, i32) {
    %c0_i32 = arith.constant 0 : i32
    %c0_i32_0 = arith.constant 0 : i32
    %c0_i32_1 = arith.constant 0 : i32
    return %c0_i32, %arg0, %c0_i32_0 : i32, i32, i32
  }
}

</mosaic_0001>

<llo_original>
// kernel: bifpn_concat2.1
$region0: #{bifpn_concat2.1}
  #allocation0 [shape = 'u32[]', space=smem, size = 0x4, offset = 0x4, fixed_abs, tag = 'smem constant byte address 0x4 - core index']
  #allocation1 [shape = 'u32[144,128]{1,0:T(1,128)}', space=vmem, size = 0x12000, scoped, tag = 'internal scratch']
  %s0 = inlined_call_operand.vmem [shape: f32[2], index: 0, kind: input, shape index: {}]
  %s1 = inlined_call_operand.vmem [shape: f32[2,8,128], index: 1, kind: input, shape index: {}]
  %s2 = inlined_call_operand.vmem [shape: f32[2,8,128], index: 2, kind: input, shape index: {}]
  %s3 = inlined_call_operand.vmem [shape: f32[2,16,128], index: 3, kind: output, shape index: {}]
  %s4 = sld [smem:[#allocation0]]
  $region91: #{bifpn_concat2.1} parent=0
    _
  %s6 = ssub.s32 1, %s4
  %s7 = scalar_select 0, %s6, %s4
  $region1: #{bifpn_concat2.1} parent=0
    #allocation2 [shape = 'u8[512]{0}', space=smem, size = 0x200, scoped, tag = 'input window, operand 0, single buffered']
    #allocation3 [shape = 's32[2]{0}', space=sflag, size = 0x8, scoped, tag = 'scoped memory for bifpn_concat2.1']
    #allocation4 [shape = 'u8[16384]{0}', space=vmem, size = 0x4000, scoped, tag = 'output window, operand 0']
    %8 = vsyncpa [#allocation3], 0
    loop: start=0, step=1, limit=4
    $region2: #{bifpn_concat2.1} parent=1 // loop_pre_header
      _
    $region3: #{bifpn_concat2.1} parent=1 // loop_header
      %s10 = sphi 0, %s14
      %p11 = scmp.ge.s32.totalorder %s10, 4
      %s18 = sphi 0, %s18
      %s20 = sphi 0, %s18
      %s21 = sphi 0, %s20
      %s35 = sphi 0, %s21
      %s45 = sphi 0, %s47
      %s48 = sphi 0, %s45
      %s49 = sphi 0, %s48
      %s65 = sphi 0, %s49
      %s77 = sphi 0, %s79
      %s80 = sphi 0, %s77
      %s81 = sphi 0, %s80
      %s97 = sphi 0, %s81
      %s103 = sphi 0, %s105
      %s106 = sphi 0, %s103
      %s107 = sphi 0, %s106
      %s123 = sphi 0, %s107
    $region4: #{bifpn_concat2.1} parent=1 // loop_header_branch
      %13 = sbr.rel (%p11) target = $region8
    $region5: #{bifpn_concat2.1} parent=1 // loop_body
      %s15 = ssub.s32 %s10, 1
      %s16 = ssub.s32 %s10, 2
      %s17 = sadd.s32 %s10, 1
      %s19 = sadd.s32 %s18, 1
      %p22 = scmp.eq.s32.totalorder %s10, 1
      %p23 = scmp.ne.s32.totalorder %s18, %s20
      %p24 = scmp.eq.s32.totalorder %s10, 0
      %p25 = por %p23, %p24
      %p26 = scmp.ne.s32.totalorder %s18, %s20
      %p27 = scmp.eq.s32.totalorder %s15, 1
      %p28 = por %p26, %p27
      %p29 = scmp.ne.s32.totalorder %s20, %s21
      %p30 = scmp.eq.s32.totalorder %s15, 0
      %p31 = por %p29, %p30
      %p32 = scmp.ne.s32.totalorder %s20, %s21
      %p33 = scmp.eq.s32.totalorder %s16, 1
      %p34 = por %p32, %p33
      %p36 = scmp.ne.s32.totalorder %s21, %s35
      %p37 = scmp.eq.s32.totalorder %s16, 0
      %p38 = por %p36, %p37
      %p39 = scmp.lt.s32.totalorder %s10, 0
      %s40 = scalar_select %p39, %s10, 0
      %p41 = scmp.lt.s32.totalorder %s17, 0
      %s42 = scalar_select %p41, %s17, 0
      %s43 = ssub.s32 %s40, %s42
      %p44 = scmp.eq.s32.totalorder %s43, 0
      %s46 = sadd.s32 %s45, 1
      %s47 = scalar_select %p44, %s45, %s46
      %p50 = pneg %p44
      %p51 = scmp.eq.s32.totalorder %s10, 1
      %p52 = por %p50, %p51
      %p53 = scmp.ne.s32.totalorder %s45, %s48
      %p54 = scmp.eq.s32.totalorder %s10, 0
      %p55 = por %p53, %p54
      %p56 = scmp.ne.s32.totalorder %s45, %s48
      %p57 = scmp.eq.s32.totalorder %s15, 1
      %p58 = por %p56, %p57
      %p59 = scmp.ne.s32.totalorder %s48, %s49
      %p60 = scmp.eq.s32.totalorder %s15, 0
      %p61 = por %p59, %p60
      %p62 = scmp.ne.s32.totalorder %s48, %s49
      %p63 = scmp.eq.s32.totalorder %s16, 1
      %p64 = por %p62, %p63
      %p66 = scmp.ne.s32.totalorder %s49, %s65
      %p67 = scmp.eq.s32.totalorder %s16, 0
      %p68 = por %p66, %p67
      %s69 = ssub.s32 %s10, 1
      %p70 = scmp.gt.s32.totalorder %s69, 0
      %s71 = scalar_select %p70, %s69, 0
      %s72 = ssub.s32 %s17, 1
      %p73 = scmp.gt.s32.totalorder %s72, 0
      %s74 = scalar_select %p73, %s72, 0
      %s75 = ssub.s32 %s71, %s74
      %p76 = scmp.eq.s32.totalorder %s75, 0
      %s78 = sadd.s32 %s77, 1
      %s79 = scalar_select %p76, %s77, %s78
      %p82 = pneg %p76
      %p83 = scmp.eq.s32.totalorder %s10, 1
      %p84 = por %p82, %p83
      %p85 = scmp.ne.s32.totalorder %s77, %s80
      %p86 = scmp.eq.s32.totalorder %s10, 0
      %p87 = por %p85, %p86
      %p88 = scmp.ne.s32.totalorder %s77, %s80
      %p89 = scmp.eq.s32.totalorder %s15, 1
      %p90 = por %p88, %p89
      %p91 = scmp.ne.s32.totalorder %s80, %s81
      %p92 = scmp.eq.s32.totalorder %s15, 0
      %p93 = por %p91, %p92
      %p94 = scmp.ne.s32.totalorder %s80, %s81
      %p95 = scmp.eq.s32.totalorder %s16, 1
      %p96 = por %p94, %p95
      %p98 = scmp.ne.s32.totalorder %s81, %s97
      %p99 = scmp.eq.s32.totalorder %s16, 0
      %p100 = por %p98, %p99
      %s101 = ssub.s32 %s10, %s17
      %p102 = scmp.eq.s32.totalorder %s101, 0
      %s104 = sadd.s32 %s103, 1
      %s105 = scalar_select %p102, %s103, %s104
      %p108 = pneg %p102
      %p109 = scmp.eq.s32.totalorder %s10, 1
      %p110 = por %p108, %p109
      %p111 = scmp.ne.s32.totalorder %s103, %s106
      %p112 = scmp.eq.s32.totalorder %s10, 0
      %p113 = por %p111, %p112
      %p114 = scmp.ne.s32.totalorder %s103, %s106
      %p115 = scmp.eq.s32.totalorder %s15, 1
      %p116 = por %p114, %p115
      %p117 = scmp.ne.s32.totalorder %s106, %s107
      %p118 = scmp.eq.s32.totalorder %s15, 0
      %p119 = por %p117, %p118
      %p120 = scmp.ne.s32.totalorder %s106, %s107
      %p121 = scmp.eq.s32.totalorder %s16, 1
      %p122 = por %p120, %p121
      %p124 = scmp.ne.s32.totalorder %s107, %s123
      %p125 = scmp.eq.s32.totalorder %s16, 0
      %p126 = por %p124, %p125
      %p127 = scmp.le.s32.totalorder 1, %s10
      %p128 = scmp.lt.s32.totalorder %s10, 3
      %p129 = pnand %p127, %p128
      %p130 = pneg %p129
      // Predicated region
      $region9: #{bifpn_concat2.1} parent=5 // pred_check
        _
      $region10: #{bifpn_concat2.1} parent=5 // pred_check_branch
        %132 = sbr.rel (%p129) target = $region12
      $region11: #{bifpn_concat2.1} parent=5 // pred_region
        %s133 = ssub.s32 %s10, 1
        // Predicated region
        $region13: #{bifpn_concat2.1} parent=11 // pred_check
          %p134 = pneg %p31
        $region14: #{bifpn_concat2.1} parent=11 // pred_check_branch
          %136 = sbr.rel (%p134) target = $region16
        $region15: #{bifpn_concat2.1} parent=11 // pred_region
          %s138 = ssub.s32 16, 16
          %139 = vsyncadd [#allocation3], %s138
          %s141 = sshll.u32 %s0, 4
          %s142 = int_to_ptr.vmem [resolvable:$true] %s141
          %144 = dma.vmem_to_smem %s142, 16, [#allocation2], [#allocation3]
        $region16: #{bifpn_concat2.1} parent=11 // pred_fallthru
          _
      $region12: #{bifpn_concat2.1} parent=5 // pred_fallthru
        _
      %p145 = scmp.lt.s32.totalorder %s10, 2
      // Predicated region
      $region17: #{bifpn_concat2.1} parent=5 // pred_check
        %p146 = pneg %p145
      $region18: #{bifpn_concat2.1} parent=5 // pred_check_branch
        %148 = sbr.rel (%p146) target = $region20
      $region19: #{bifpn_concat2.1} parent=5 // pred_region
        // Predicated region
        $region21: #{bifpn_concat2.1} parent=19 // pred_check
          %p149 = pneg %p55
        $region22: #{bifpn_concat2.1} parent=19 // pred_check_branch
          %151 = sbr.rel (%p149) target = $region24
        $region23: #{bifpn_concat2.1} parent=19 // pred_region
          %p152 = scmp.lt.s32.totalorder %s10, 0
          %s153 = scalar_select %p152, %s10, 0
          %p154 = scmp.lt.s32.totalorder %s153, 0
          %s155 = scalar_select %p154, %s153, 0
          %s156 = smul.addr %s155, 8
          %s157 = scalar_lea.vmem %s1, %s156
          %p158 = scmp.lt.s32.totalorder %s10, 0
          %s159 = scalar_select %p158, %s10, 0
        $region24: #{bifpn_concat2.1} parent=19 // pred_fallthru
          _
        // Predicated region
        $region25: #{bifpn_concat2.1} parent=19 // pred_check
          %p160 = pneg %p87
        $region26: #{bifpn_concat2.1} parent=19 // pred_check_branch
          %162 = sbr.rel (%p160) target = $region28
        $region27: #{bifpn_concat2.1} parent=19 // pred_region
          %s163 = ssub.s32 %s10, 1
          %p164 = scmp.gt.s32.totalorder %s163, 0
          %s165 = scalar_select %p164, %s163, 0
          %p166 = scmp.lt.s32.totalorder %s165, 0
          %s167 = scalar_select %p166, %s165, 0
          %s168 = smul.addr %s167, 8
          %s169 = scalar_lea.vmem %s2, %s168
          %s170 = ssub.s32 %s10, 1
          %p171 = scmp.gt.s32.totalorder %s170, 0
          %s172 = scalar_select %p171, %s170, 0
        $region28: #{bifpn_concat2.1} parent=19 // pred_fallthru
          _
      $region20: #{bifpn_concat2.1} parent=5 // pred_fallthru
        _
      %p173 = scmp.le.s32.totalorder 1, %s10
      %p174 = scmp.lt.s32.totalorder %s10, 3
      %p175 = pnand %p173, %p174
      %p176 = pneg %p175
      // Predicated region
      $region29: #{bifpn_concat2.1} parent=5 // pred_check
        _
      $region30: #{bifpn_concat2.1} parent=5 // pred_check_branch
        %178 = sbr.rel (%p175) target = $region32
      $region31: #{bifpn_concat2.1} parent=5 // pred_region
        %s179 = ssub.s32 %s10, 1
        // Predicated region
        $region33: #{bifpn_concat2.1} parent=31 // pred_check
          %p180 = pneg %p31
        $region34: #{bifpn_concat2.1} parent=31 // pred_check_branch
          %182 = sbr.rel (%p180) target = $region36
        $region35: #{bifpn_concat2.1} parent=31 // pred_region
          %183 = dma.done [#allocation3], 16
        $region36: #{bifpn_concat2.1} parent=31 // pred_fallthru
          _
        %184 = sfence
        %p185 = pneg %p31
        %p186 = pneg %p28
        %p187 = scmp.lt.s32.totalorder %s15, 0
        %s188 = scalar_select %p187, %s15, 0
        %p189 = scmp.lt.s32.totalorder %s188, 0
        %s190 = scalar_select %p189, %s188, 0
        %s191 = smul.addr %s190, 8
        %s192 = scalar_lea.vmem %s1, %s191
        %p193 = pneg %p61
        %p194 = pneg %p58
        %s195 = ssub.s32 %s15, 1
        %p196 = scmp.gt.s32.totalorder %s195, 0
        %s197 = scalar_select %p196, %s195, 0
        %p198 = scmp.lt.s32.totalorder %s197, 0
        %s199 = scalar_select %p198, %s197, 0
        %s200 = smul.addr %s199, 8
        %s201 = scalar_lea.vmem %s2, %s200
        %p202 = pneg %p93
        %p203 = pneg %p90
        %p204 = pneg %p119
        %p205 = pneg %p116
        %s206 = sand.u32 %s106, 1
        %s207 = sand.u32 %s106, 1
        %s208 = smul.addr %s207, 16
        %s209 = scalar_lea.vmem [#allocation4], %s208
        %p210 = scmp.lt.s32.totalorder %s15, 0
        %s211 = scalar_select %p210, %s15, 0
        %p212 = scmp.lt.s32.totalorder %s211, 0
        %s213 = scalar_select %p212, %s211, 0
        %s214 = smul.addr %s213, 8
        %s215 = scalar_lea.vmem %s1, %s214
        %p216 = scmp.lt.s32.totalorder %s15, 0
        %s217 = scalar_select %p216, %s15, 0
        %s218 = ssub.s32 %s15, 1
        %p219 = scmp.gt.s32.totalorder %s218, 0
        %s220 = scalar_select %p219, %s218, 0
        %p221 = scmp.lt.s32.totalorder %s220, 0
        %s222 = scalar_select %p221, %s220, 0
        %s223 = smul.addr %s222, 8
        %s224 = scalar_lea.vmem %s2, %s223
        %s225 = ssub.s32 %s15, 1
        %p226 = scmp.gt.s32.totalorder %s225, 0
        %s227 = scalar_select %p226, %s225, 0
        %p228 = scmp.lt.s32.totalorder %s15, 1
        // Predicated region
        $region37: #{bifpn_concat2.1} parent=31 // pred_check
          %p229 = pneg %p228
        $region38: #{bifpn_concat2.1} parent=31 // pred_check_branch
          %231 = sbr.rel (%p229) target = $region40
        $region39: #{bifpn_concat2.1} parent=31 // pred_region
          %v232 = vld [vmem:[%s215] sm:$0xff]
          %v233 = vld [vmem:[%s215 + $0x8] sm:$0xff]
          %s234 = sld [smem:[#allocation2]]
          %v235 = vstv %s234
          %v236 = vmul.f32 %v232, %v235
          %v237 = vmul.f32 %v233, %v235
          %238 = vst [vmem:[%s209] sm:$0xff] %v236
          %239 = vst [vmem:[%s209 + $0x8] sm:$0xff] %v237
        $region40: #{bifpn_concat2.1} parent=31 // pred_fallthru
          _
        %p240 = scmp.ge.s32.totalorder %s15, 1
        // Predicated region
        $region41: #{bifpn_concat2.1} parent=31 // pred_check
          %p241 = pneg %p240
        $region42: #{bifpn_concat2.1} parent=31 // pred_check_branch
          %243 = sbr.rel (%p241) target = $region44
        $region43: #{bifpn_concat2.1} parent=31 // pred_region
          %v244 = vld [vmem:[%s224] sm:$0xff]
          %v245 = vld [vmem:[%s224 + $0x8] sm:$0xff]
          %s246 = sld [smem:[#allocation2 + $0x1]]
          %v247 = vstv %s246
          %v248 = vmul.f32 %v244, %v247
          %v249 = vmul.f32 %v245, %v247
          %250 = vst [vmem:[%s209] sm:$0xff] %v248
          %251 = vst [vmem:[%s209 + $0x8] sm:$0xff] %v249
        $region44: #{bifpn_concat2.1} parent=31 // pred_fallthru
          _
        %s252 = sand.u32 %s106, 1
        %s253 = sand.u32 %s106, 1
        %s254 = smul.addr %s253, 16
        %s255 = scalar_lea.vmem [#allocation4], %s254
        // Predicated region
        $region45: #{bifpn_concat2.1} parent=31 // pred_check
          %p256 = pneg %p116
        $region46: #{bifpn_concat2.1} parent=31 // pred_check_branch
          %258 = sbr.rel (%p256) target = $region48
        $region47: #{bifpn_concat2.1} parent=31 // pred_region
          %s259 = smul.addr %s15, 8
          %s260 = scalar_lea.vmem %s3, %s259
          // Predicated region
          $region49: #{bifpn_concat2.1} parent=47 // pred_check
            _
          $region50: #{bifpn_concat2.1} parent=47 // pred_check_branch
            %262 = sbr.rel (0) target = $region52
          $region51: #{bifpn_concat2.1} parent=47 // pred_region
            // Predicated region
            $region53: #{bifpn_concat2.1} parent=51 // pred_check
              _
            $region54: #{bifpn_concat2.1} parent=51 // pred_check_branch
              %264 = sbr.rel (0) target = $region56
            $region55: #{bifpn_concat2.1} parent=51 // pred_region
              // Predicated region
              $region68: #{bifpn_concat2.1} parent=55 // pred_check
                _
              $region69: #{bifpn_concat2.1} parent=55 // pred_check_branch
                %281 = sbr.rel (0) target = $region71
              $region70: #{bifpn_concat2.1} parent=55 // pred_region
                loop: start=0, step=1, limit=1
                $region72: #{bifpn_concat2.1} parent=70 // loop_pre_header
                  _
                $region73: #{bifpn_concat2.1} parent=70 // loop_header
                  %s283 = sphi 0, %s287
                  %p284 = scmp.ge.s32.totalorder %s283, 1
                  %s288 = sphi %s255, %s255
                  %s289 = sphi %s260, %s260
                $region74: #{bifpn_concat2.1} parent=70 // loop_header_branch
                  %286 = sbr.rel (%p284) target = $region78
                $region75: #{bifpn_concat2.1} parent=70 // loop_body
                  %v290 = vld [vmem:[%s288] sm:$0xff]
                  %291 = vst [vmem:[%s289] sm:$0xff] %v290
                  %v292 = vld [vmem:[%s288 + $0x8] sm:$0xff]
                  %293 = vst [vmem:[%s289 + $0x10] sm:$0xff] %v292
                $region76: #{bifpn_concat2.1} parent=70 // loop_footer
                  %s287 = sadd.s32 1, %s283
                $region77: #{bifpn_concat2.1} parent=70 // loop_footer_branch
                  %282 = sbr.rel target = $region73
                $region78: #{bifpn_concat2.1} parent=70 // loop_exit
                  _
              $region71: #{bifpn_concat2.1} parent=55 // pred_fallthru
                _
              // Predicated region
              $region79: #{bifpn_concat2.1} parent=55 // pred_check
                _
              $region80: #{bifpn_concat2.1} parent=55 // pred_check_branch
                %295 = sbr.rel target = $region82
              $region81: #{bifpn_concat2.1} parent=55 // pred_region
                _
              $region82: #{bifpn_concat2.1} parent=55 // pred_fallthru
                _
            $region56: #{bifpn_concat2.1} parent=51 // pred_fallthru
              _
            // Predicated region
            $region57: #{bifpn_concat2.1} parent=51 // pred_check
              _
            $region58: #{bifpn_concat2.1} parent=51 // pred_check_branch
              %266 = sbr.rel target = $region60
            $region59: #{bifpn_concat2.1} parent=51 // pred_region
              loop: start=0, step=1, limit=1
              $region61: #{bifpn_concat2.1} parent=59 // loop_pre_header
                _
              $region62: #{bifpn_concat2.1} parent=59 // loop_header
                %s269 = sphi 0, %s273
                %p270 = scmp.ge.s32.totalorder %s269, 1
                %s274 = sphi %s255, %s255
                %s275 = sphi %s260, %s260
              $region63: #{bifpn_concat2.1} parent=59 // loop_header_branch
                %272 = sbr.rel (%p270) target = $region67
              $region64: #{bifpn_concat2.1} parent=59 // loop_body
                %v276 = vld [vmem:[%s274] sm:$0xff]
                %277 = vst [vmem:[%s275] sm:$0xff] %v276
                %v278 = vld [vmem:[%s274 + $0x8] sm:$0xff]
                %279 = vst [vmem:[%s275 + $0x10] sm:$0xff] %v278
              $region65: #{bifpn_concat2.1} parent=59 // loop_footer
                %s273 = sadd.s32 1, %s269
              $region66: #{bifpn_concat2.1} parent=59 // loop_footer_branch
                %268 = sbr.rel target = $region62
              $region67: #{bifpn_concat2.1} parent=59 // loop_exit
                _
            $region60: #{bifpn_concat2.1} parent=51 // pred_fallthru
              _
          $region52: #{bifpn_concat2.1} parent=47 // pred_fallthru
            _
          %296 = vnop
        $region48: #{bifpn_concat2.1} parent=31 // pred_fallthru
          _
      $region32: #{bifpn_concat2.1} parent=5 // pred_fallthru
        _
      %p297 = scmp.le.s32.totalorder 2, %s10
      // Predicated region
      $region83: #{bifpn_concat2.1} parent=5 // pred_check
        %p298 = pneg %p297
      $region84: #{bifpn_concat2.1} parent=5 // pred_check_branch
        %300 = sbr.rel (%p298) target = $region86
      $region85: #{bifpn_concat2.1} parent=5 // pred_region
        %s301 = ssub.s32 %s10, 2
        // Predicated region
        $region87: #{bifpn_concat2.1} parent=85 // pred_check
          %p302 = pneg %p122
        $region88: #{bifpn_concat2.1} parent=85 // pred_check_branch
          %304 = sbr.rel (%p302) target = $region90
        $region89: #{bifpn_concat2.1} parent=85 // pred_region
          %s305 = sand.u32 %s107, 1
          %s306 = sand.u32 %s107, 1
          %s307 = smul.addr %s306, 16
          %s308 = scalar_lea.vmem [#allocation4], %s307
        $region90: #{bifpn_concat2.1} parent=85 // pred_fallthru
          _
      $region86: #{bifpn_concat2.1} parent=5 // pred_fallthru
        _
    $region6: #{bifpn_concat2.1} parent=1 // loop_footer
      %s14 = sadd.s32 1, %s10
    $region7: #{bifpn_concat2.1} parent=1 // loop_footer_branch
      %9 = sbr.rel target = $region3
    $region8: #{bifpn_concat2.1} parent=1 // loop_exit
      _
    %309 = vsyncpa [#allocation3], 1
    %s310 = scalar_lea.sflag [#allocation3], 1
    %311 = vsyncpa %s310, 1

</llo_original>
